<compile_context>
chip_gen: v6e
topology: v6e:2x2x1
jax: 0.10.0
libtpu: 0.0.40
codegen_flags: <defaults>
</compile_context>

<pallas_src>
import math

import numpy as np
import jax
import jax.numpy as jnp
from jax.experimental import pallas as pl
from jax.experimental.pallas import tpu as pltpu

N_QUBITS = 4
N_LAYERS = 2


# ----------------------------------------------------------------------------
# 4-qubit statevector simulation of the PennyLane circuit (plain-JAX glue).
# Used only by `reference_forward`: the forward output is exactly independent of
# the quantum path (softmax of a seq-constant score matrix is uniform).
# Wire 0 is the most-significant bit (PennyLane convention).
# ----------------------------------------------------------------------------
def _ry(theta):
    c = jnp.cos(theta / 2)
    s = jnp.sin(theta / 2)
    z = jnp.zeros_like(c)
    re = jnp.stack([jnp.stack([c, -s]), jnp.stack([s, c])])
    im = jnp.stack([jnp.stack([z, z]), jnp.stack([z, z])])
    return jax.lax.complex(re, im)


def _rz(phi):
    c = jnp.cos(phi / 2)
    s = jnp.sin(phi / 2)
    z = jnp.zeros_like(c)
    re = jnp.stack([jnp.stack([c, z]), jnp.stack([z, c])])
    im = jnp.stack([jnp.stack([-s, z]), jnp.stack([z, s])])
    return jax.lax.complex(re, im)


def _rot(phi, theta, omega):
    # PennyLane Rot(phi, theta, omega) = RZ(omega) @ RY(theta) @ RZ(phi)
    return _rz(omega) @ _ry(theta) @ _rz(phi)


def _apply_1q(state, u, wire):
    state = jnp.tensordot(u, state, axes=[[1], [wire]])
    return jnp.moveaxis(state, 0, wire)


_CNOT = jnp.array(
    [[1, 0, 0, 0], [0, 1, 0, 0], [0, 0, 0, 1], [0, 0, 1, 0]], dtype=jnp.complex64
).reshape(2, 2, 2, 2)


def _apply_cnot(state, control, target):
    state = jnp.tensordot(_CNOT, state, axes=[[2, 3], [control, target]])
    return jnp.moveaxis(state, [0, 1], [control, target])


def quantum_circuit(inputs, weights):
    """inputs: (N_QUBITS,), weights: (N_LAYERS, N_QUBITS, 3) -> <Z_i> (N_QUBITS,)."""
    n = N_QUBITS
    state = jnp.zeros((2,) * n, dtype=jnp.complex64)
    state = state.at[(0,) * n].set(1.0 + 0.0j)
    # angle encoding
    for i in range(n):
        state = _apply_1q(state, _ry(inputs[i]), i)
    # StronglyEntanglingLayers: Rot per wire + ring of CNOTs with range r = l % (n-1) + 1
    for l in range(N_LAYERS):
        r = (l % (n - 1)) + 1
        for i in range(n):
            state = _apply_1q(
                state, _rot(weights[l, i, 0], weights[l, i, 1], weights[l, i, 2]), i
            )
        for i in range(n):
            state = _apply_cnot(state, i, (i + r) % n)
    probs = (jnp.real(state) ** 2 + jnp.imag(state) ** 2).reshape(-1)
    idx = jnp.arange(2**n)
    z = []
    for i in range(n):
        bit = (idx >> (n - 1 - i)) & 1
        z.append(jnp.sum(probs * (1.0 - 2.0 * bit)))
    return jnp.stack(z).astype(jnp.float32)


# ----------------------------------------------------------------------------
# Fused Pallas kernel: seq-mean of value + v_linear + out_proj + broadcast store
# ----------------------------------------------------------------------------
def _attn_kernel(v_ref, wv_ref, bv_ref, wo_ref, bo_ref, out_ref):
    bt, S, D = v_ref.shape
    inv_s = 1.0 / float(S)

    # softmax(seq-constant scores) == 1/S exactly  =>  ctx = mean_seq(v_linear(value));
    # the mean commutes with the linear layer, so reduce first (sublane sum over the
    # seq axis) and run the two tiny (bt, D) @ (D, D) MXU matmuls on the reduced row.
    vbar = jnp.sum(v_ref[...].astype(jnp.float32), axis=1) * inv_s          # (bt, D)
    ctx = jnp.dot(vbar, wv_ref[...], preferred_element_type=jnp.float32) + bv_ref[...]
    row = jnp.dot(ctx, wo_ref[...], preferred_element_type=jnp.float32) + bo_ref[...]

    # Broadcast the identical row across seq at store time, as a lane-dense (bt, S*D)
    # slab (concat along the minor/lane axis; S*D is a multiple of 128 -> unmasked vst).
    out_ref[0] = jnp.concatenate([row] * S, axis=-1).astype(out_ref.dtype)


# ----------------------------------------------------------------------------
# Tiling heuristics
# ----------------------------------------------------------------------------
def _num_tensorcores():
    try:
        dev = jax.devices()[0]
    except Exception:
        return 1
    for attr in ("num_cores", "core_count"):
        n = getattr(dev, attr, None)
        if isinstance(n, int) and n > 0:
            return n
    return 1


def _pick_batch_tile(B, S, D, itemsize, requested=None):
    if requested is not None:
        assert B % requested == 0, "batch_tile must divide the batch size"
        return requested
    # Default: a single grid step (optimal on single-TC v5e / v6e: no per-step
    # pipeline overhead, and "parallel" semantics buys nothing there).
    bt = B
    n_tc = _num_tensorcores()
    if n_tc > 1 and B % n_tc == 0 and (B // n_tc) * S * D >= 4 * 8 * 128:
        # >=2 "parallel" grid steps so each TensorCore (v7x / megacore) gets a block
        # that is at least a few (8,128) tiles of work.
        bt = B // n_tc
    # Clamp so double-buffered value block + f32 output block stay well inside the
    # scoped VMEM budget (conservative vs v7x's 32 MiB scoped / 64 MiB physical).
    budget = 8 * 1024 * 1024

    def _block_bytes(t):
        return 2 * t * S * D * (itemsize + 4)

    while bt > 1 and _block_bytes(bt) > budget:
        bt = max(d for d in range(1, bt) if B % d == 0)
    return bt


# ----------------------------------------------------------------------------
# Wrapper
# ----------------------------------------------------------------------------
def quantum_attention_forward(p, query, key, value, *, batch_tile=None):
    # query/key only feed the quantum score path; because the softmax of the
    # seq-constant score matrix is exactly uniform, their contribution to the
    # forward output is exactly zero, so they are not consumed here.
    B, S, D = value.shape
    bt = _pick_batch_tile(B, S, D, value.dtype.itemsize, batch_tile)
    nb = B // bt

    cost = pl.CostEstimate(
        flops=int(4 * B * D * D + B * S * D),
        transcendentals=0,
        bytes_accessed=int(
            B * S * D * (value.dtype.itemsize + 4) + (2 * D * D + 2 * D) * 4
        ),
    )

    out = pl.pallas_call(
        _attn_kernel,
        out_shape=jax.ShapeDtypeStruct((nb, bt, S * D), jnp.float32),
        grid=(nb,),
        in_specs=[
            pl.BlockSpec((bt, S, D), lambda b: (b, 0, 0)),   # value (last two dims full)
            pl.BlockSpec((D, D), lambda b: (0, 0)),          # wv (constant block)
            pl.BlockSpec((1, D), lambda b: (0, 0)),          # bv
            pl.BlockSpec((D, D), lambda b: (0, 0)),          # wo
            pl.BlockSpec((1, D), lambda b: (0, 0)),          # bo
        ],
        out_specs=pl.BlockSpec((1, bt, S * D), lambda b: (b, 0, 0)),  # lane-dense slab
        compiler_params=pltpu.CompilerParams(dimension_semantics=("parallel",)),
        cost_estimate=cost,
    )(value, p["wv"], p["bv"], p["wo"], p["bo"])

    return out.reshape(B, S, D)


# ----------------------------------------------------------------------------
# Pure-JAX reference mirroring the (repaired) PyTorch semantics, full path.
# ----------------------------------------------------------------------------
def reference_forward(p, query, key, value):
    B, S, D = query.shape
    q = query @ p["wq"] + p["bq"][0]
    k = key @ p["wk"] + p["bk"][0]
    v = value @ p["wv"] + p["bv"][0]
    circuit_v = jax.vmap(quantum_circuit, in_axes=(0, None))
    qq = circuit_v(q[:, 0, :], p["q_qw"])
    kq = circuit_v(k[:, 0, :], p["k_qw"])
    qqe = jnp.broadcast_to(qq[:, None, :], (B, S, N_QUBITS))
    kqe = jnp.broadcast_to(kq[:, None, :], (B, S, N_QUBITS))
    scores = jnp.einsum("bsq,btq->bst", qqe, kqe) / math.sqrt(N_QUBITS)
    attn = jax.nn.softmax(scores, axis=-1)
    out = jnp.einsum("bst,btd->bsd", attn, v)
    return out @ p["wo"] + p["bo"][0]


if __name__ == "__main__":
    B, S, D = 2, 8, 32

    root = jax.random.PRNGKey(0)
    ks = jax.random.split(root, 13)
    query = jax.random.normal(ks[0], (B, S, D), jnp.float32)
    key_in = jax.random.normal(ks[1], (B, S, D), jnp.float32)
    value = jax.random.normal(ks[2], (B, S, D), jnp.float32)

    params = dict(
        wq=0.1 * jax.random.normal(ks[3], (D, N_QUBITS), jnp.float32),
        bq=0.1 * jax.random.normal(ks[4], (1, N_QUBITS), jnp.float32),
        wk=0.1 * jax.random.normal(ks[5], (D, N_QUBITS), jnp.float32),
        bk=0.1 * jax.random.normal(ks[6], (1, N_QUBITS), jnp.float32),
        wv=0.1 * jax.random.normal(ks[7], (D, D), jnp.float32),
        bv=0.1 * jax.random.normal(ks[8], (1, D), jnp.float32),
        wo=0.1 * jax.random.normal(ks[9], (D, D), jnp.float32),
        bo=0.1 * jax.random.normal(ks[10], (1, D), jnp.float32),
        q_qw=0.1 * jax.random.normal(ks[11], (N_LAYERS, N_QUBITS, 3), jnp.float32),
        k_qw=0.1 * jax.random.normal(ks[12], (N_LAYERS, N_QUBITS, 3), jnp.float32),
    )

    out = quantum_attention_forward(params, query, key_in, value)
    out = jax.block_until_ready(out)

    ref = jax.block_until_ready(reference_forward(params, query, key_in, value))
    np.testing.assert_allclose(np.asarray(out), np.asarray(ref), rtol=2e-3, atol=2e-3)

    print("KERNEL_OK")
</pallas_src>

<mosaic_0001>
module attributes {stable_mosaic.version = 11 : i64} {
  func.func @_attn_kernel(%arg0: i32, %arg1: memref<2x8x32xf32, #tpu.memory_space<vmem>>, %arg2: memref<32x32xf32, #tpu.memory_space<vmem>>, %arg3: memref<1x32xf32, #tpu.memory_space<vmem>>, %arg4: memref<32x32xf32, #tpu.memory_space<vmem>>, %arg5: memref<1x32xf32, #tpu.memory_space<vmem>>, %arg6: memref<1x2x256xf32, #tpu.memory_space<vmem>>) attributes {dimension_semantics = [#tpu.dimension_semantics<parallel>], iteration_bounds = array<i64: 1>, scalar_prefetch = 0 : i64, scratch_operands = 0 : i64, tpu.core_type = #tpu.core_type<tc>, window_params = [{transform_indices = @transform_0, window_bounds = array<i64: 2, 8, 32>}, {pipeline_mode = #tpu.pipeline_mode<synchronous>, transform_indices = @transform_1, window_bounds = array<i64: 32, 32>}, {pipeline_mode = #tpu.pipeline_mode<synchronous>, transform_indices = @transform_2, window_bounds = array<i64: 1, 32>}, {pipeline_mode = #tpu.pipeline_mode<synchronous>, transform_indices = @transform_3, window_bounds = array<i64: 32, 32>}, {pipeline_mode = #tpu.pipeline_mode<synchronous>, transform_indices = @transform_4, window_bounds = array<i64: 1, 32>}, {transform_indices = @transform_5, window_bounds = array<i64: 1, 2, 256>}]} {
    %c0 = arith.constant 0 : index
    %c0_0 = arith.constant 0 : index
    %c0_1 = arith.constant 0 : index
    %0 = vector.load %arg1[%c0, %c0_0, %c0_1] : memref<2x8x32xf32, #tpu.memory_space<vmem>>, vector<2x8x32xf32>
    %cst = arith.constant dense<0.000000e+00> : vector<2x32xf32>
    %1 = vector.multi_reduction <add>, %0, %cst [1] : vector<2x8x32xf32> to vector<2x32xf32>
    %cst_2 = arith.constant 1.250000e-01 : f32
    %2 = vector.broadcast %cst_2 : f32 to vector<2x32xf32>
    %3 = arith.mulf %1, %2 : vector<2x32xf32>
    %c0_3 = arith.constant 0 : index
    %c0_4 = arith.constant 0 : index
    %4 = vector.load %arg2[%c0_3, %c0_4] : memref<32x32xf32, #tpu.memory_space<vmem>>, vector<32x32xf32>
    %cst_5 = arith.constant dense<0.000000e+00> : vector<2x32xf32>
    %5 = tpu.matmul %3, %4, %cst_5 {dimension_numbers = #tpu.dot_dimension_numbers<[1], [0], [0], [1], [0, 0, 1, 1], [], []>} : vector<2x32xf32>, vector<32x32xf32>, vector<2x32xf32> -> vector<2x32xf32>
    %c0_6 = arith.constant 0 : index
    %c0_7 = arith.constant 0 : index
    %6 = vector.load %arg3[%c0_6, %c0_7] : memref<1x32xf32, #tpu.memory_space<vmem>>, vector<1x32xf32>
    %7 = vector.broadcast %6 : vector<1x32xf32> to vector<2x32xf32>
    %8 = arith.addf %5, %7 : vector<2x32xf32>
    %c0_8 = arith.constant 0 : index
    %c0_9 = arith.constant 0 : index
    %9 = vector.load %arg4[%c0_8, %c0_9] : memref<32x32xf32, #tpu.memory_space<vmem>>, vector<32x32xf32>
    %cst_10 = arith.constant dense<0.000000e+00> : vector<2x32xf32>
    %10 = tpu.matmul %8, %9, %cst_10 {dimension_numbers = #tpu.dot_dimension_numbers<[1], [0], [0], [1], [0, 0, 1, 1], [], []>} : vector<2x32xf32>, vector<32x32xf32>, vector<2x32xf32> -> vector<2x32xf32>
    %c0_11 = arith.constant 0 : index
    %c0_12 = arith.constant 0 : index
    %11 = vector.load %arg5[%c0_11, %c0_12] : memref<1x32xf32, #tpu.memory_space<vmem>>, vector<1x32xf32>
    %12 = vector.broadcast %11 : vector<1x32xf32> to vector<2x32xf32>
    %13 = arith.addf %10, %12 : vector<2x32xf32>
    %14 = tpu.concatenate %13, %13, %13, %13, %13, %13, %13, %13 in 1 : vector<2x32xf32>, vector<2x32xf32>, vector<2x32xf32>, vector<2x32xf32>, vector<2x32xf32>, vector<2x32xf32>, vector<2x32xf32>, vector<2x32xf32> -> vector<2x256xf32>
    %c0_13 = arith.constant 0 : index
    %c0_14 = arith.constant 0 : index
    %c0_15 = arith.constant 0 : index
    %15 = vector.load %arg6[%c0_13, %c0_14, %c0_15] : memref<1x2x256xf32, #tpu.memory_space<vmem>>, vector<1x2x256xf32>
    %16 = vector.shape_cast %15 : vector<1x2x256xf32> to vector<2x256xf32>
    %17 = vector.shape_cast %14 : vector<2x256xf32> to vector<1x2x256xf32>
    tpu.vector_store %arg6[%c0_13, %c0_14, %c0_15], %17 {strides = array<i32>} : memref<1x2x256xf32, #tpu.memory_space<vmem>>, vector<1x2x256xf32>,
    return
  }
  func.func @transform_0(%arg0: i32) -> (i32, i32, i32) {
    %c0_i32 = arith.constant 0 : i32
    %c0_i32_0 = arith.constant 0 : i32
    %c0_i32_1 = arith.constant 0 : i32
    return %arg0, %c0_i32, %c0_i32_0 : i32, i32, i32
  }
  func.func @transform_1(%arg0: i32) -> (i32, i32) {
    %c0_i32 = arith.constant 0 : i32
    %c0_i32_0 = arith.constant 0 : i32
    %c0_i32_1 = arith.constant 0 : i32
    return %c0_i32, %c0_i32_0 : i32, i32
  }
  func.func @transform_2(%arg0: i32) -> (i32, i32) {
    %c0_i32 = arith.constant 0 : i32
    %c0_i32_0 = arith.constant 0 : i32
    %c0_i32_1 = arith.constant 0 : i32
    return %c0_i32, %c0_i32_0 : i32, i32
  }
  func.func @transform_3(%arg0: i32) -> (i32, i32) {
    %c0_i32 = arith.constant 0 : i32
    %c0_i32_0 = arith.constant 0 : i32
    %c0_i32_1 = arith.constant 0 : i32
    return %c0_i32, %c0_i32_0 : i32, i32
  }
  func.func @transform_4(%arg0: i32) -> (i32, i32) {
    %c0_i32 = arith.constant 0 : i32
    %c0_i32_0 = arith.constant 0 : i32
    %c0_i32_1 = arith.constant 0 : i32
    return %c0_i32, %c0_i32_0 : i32, i32
  }
  func.func @transform_5(%arg0: i32) -> (i32, i32, i32) {
    %c0_i32 = arith.constant 0 : i32
    %c0_i32_0 = arith.constant 0 : i32
    %c0_i32_1 = arith.constant 0 : i32
    return %arg0, %c0_i32, %c0_i32_0 : i32, i32, i32
  }
}

</mosaic_0001>

<llo_original>
// kernel: tpu_custom_call.1
$region0: #{tpu_custom_call.1}
  #allocation0 [shape = 'u32[]', space=smem, size = 0x4, offset = 0x4, fixed_abs, tag = 'smem constant byte address 0x4 - core index']
  #allocation1 [shape = 'u32[144,128]{1,0:T(1,128)}', space=vmem, size = 0x12000, scoped, tag = 'internal scratch']
  %s0 = inlined_call_operand.hbm [shape: f32[2,8,32], index: 0, kind: input, shape index: {}]
  %s1 = inlined_call_operand.hbm [shape: f32[32,32], index: 1, kind: input, shape index: {}]
  %s2 = inlined_call_operand.vmem [shape: f32[1,32], index: 2, kind: input, shape index: {}]
  %s3 = inlined_call_operand.hbm [shape: f32[32,32], index: 3, kind: input, shape index: {}]
  %s4 = inlined_call_operand.vmem [shape: f32[1,32], index: 4, kind: input, shape index: {}]
  %s5 = inlined_call_operand.hbm [shape: f32[1,2,256], index: 5, kind: output, shape index: {}]
  %s6 = sld [smem:[#allocation0]]
  $region42: #{tpu_custom_call.1} parent=0
    _
  %s8 = ssub.s32 1, %s6
  %s9 = scalar_select 0, %s8, %s6
  $region1: #{tpu_custom_call.1} parent=0
    #allocation2 [shape = 'u8[8192]{0}', space=vmem, size = 0x2000, scoped, tag = 'input window, operand 0, single buffered']
    #allocation3 [shape = 's32[1]{0}', space=sflag, size = 0x4, scoped, tag = 'scoped memory for tpu_custom_call.1']
    #allocation4 [shape = 's32[1]{0}', space=sflag, size = 0x4, scoped, tag = 'scoped memory for tpu_custom_call.1']
    #allocation5 [shape = 'u8[16384]{0}', space=vmem, size = 0x4000, scoped, tag = 'input window, operand 1, single buffered']
    #allocation6 [shape = 's32[1]{0}', space=sflag, size = 0x4, scoped, tag = 'scoped memory for tpu_custom_call.1']
    #allocation7 [shape = 'u8[16384]{0}', space=vmem, size = 0x4000, scoped, tag = 'input window, operand 3, single buffered']
    #allocation8 [shape = 'u8[2048]{0}', space=vmem, size = 0x800, scoped, tag = 'output window, operand 0, single buffered']
    %10 = vsyncpa [#allocation3], 0
    %11 = vsyncpa [#allocation6], 0
    %12 = vsyncpa [#allocation4], 0
    // Predicated region
    $region2: #{tpu_custom_call.1} parent=1 // pred_check
      _
    $region3: #{tpu_custom_call.1} parent=1 // pred_check_branch
      %14 = sbr.rel (0) target = $region5
    $region4: #{tpu_custom_call.1} parent=1 // pred_region
      %s16 = ssub.s32 256, 256
      %17 = vsyncadd [#allocation3], %s16
      %s18 = sshll.u32 [#allocation2], 4
      %s19 = int_to_ptr.vmem [resolvable:$true] %s18
      %24 = dma.hbm_to_vmem [thread:$0]  %s0, 256, %s19, [#allocation3], 128, 128, 8
    $region5: #{tpu_custom_call.1} parent=1 // pred_fallthru
      _
    // Predicated region
    $region6: #{tpu_custom_call.1} parent=1 // pred_check
      _
    $region7: #{tpu_custom_call.1} parent=1 // pred_check_branch
      %26 = sbr.rel (0) target = $region9
    $region8: #{tpu_custom_call.1} parent=1 // pred_region
      %s28 = ssub.s32 512, 512
      %29 = vsyncadd [#allocation6], %s28
      %s30 = sshll.u32 [#allocation5], 4
      %s31 = int_to_ptr.vmem [resolvable:$true] %s30
      %36 = dma.hbm_to_vmem [thread:$0]  %s1, 512, %s31, [#allocation6], 128, 128, 8
    $region9: #{tpu_custom_call.1} parent=1 // pred_fallthru
      _
    // Predicated region
    $region10: #{tpu_custom_call.1} parent=1 // pred_check
      _
    $region11: #{tpu_custom_call.1} parent=1 // pred_check_branch
      %38 = sbr.rel (0) target = $region13
    $region12: #{tpu_custom_call.1} parent=1 // pred_region
      _
    $region13: #{tpu_custom_call.1} parent=1 // pred_fallthru
      _
    // Predicated region
    $region14: #{tpu_custom_call.1} parent=1 // pred_check
      _
    $region15: #{tpu_custom_call.1} parent=1 // pred_check_branch
      %40 = sbr.rel (0) target = $region17
    $region16: #{tpu_custom_call.1} parent=1 // pred_region
      %s42 = ssub.s32 512, 512
      %43 = vsyncadd [#allocation6], %s42
      %s44 = sshll.u32 [#allocation7], 4
      %s45 = int_to_ptr.vmem [resolvable:$true] %s44
      %50 = dma.hbm_to_vmem [thread:$0]  %s3, 512, %s45, [#allocation6], 128, 128, 8
    $region17: #{tpu_custom_call.1} parent=1 // pred_fallthru
      _
    // Predicated region
    $region18: #{tpu_custom_call.1} parent=1 // pred_check
      _
    $region19: #{tpu_custom_call.1} parent=1 // pred_check_branch
      %52 = sbr.rel (0) target = $region21
    $region20: #{tpu_custom_call.1} parent=1 // pred_region
      _
    $region21: #{tpu_custom_call.1} parent=1 // pred_fallthru
      _
    // Predicated region
    $region22: #{tpu_custom_call.1} parent=1 // pred_check
      _
    $region23: #{tpu_custom_call.1} parent=1 // pred_check_branch
      %54 = sbr.rel (0) target = $region25
    $region24: #{tpu_custom_call.1} parent=1 // pred_region
      %55 = dma.done [#allocation3], 256
    $region25: #{tpu_custom_call.1} parent=1 // pred_fallthru
      _
    // Predicated region
    $region26: #{tpu_custom_call.1} parent=1 // pred_check
      _
    $region27: #{tpu_custom_call.1} parent=1 // pred_check_branch
      %57 = sbr.rel (0) target = $region29
    $region28: #{tpu_custom_call.1} parent=1 // pred_region
      %58 = dma.done [#allocation6], 512
    $region29: #{tpu_custom_call.1} parent=1 // pred_fallthru
      _
    // Predicated region
    $region30: #{tpu_custom_call.1} parent=1 // pred_check
      _
    $region31: #{tpu_custom_call.1} parent=1 // pred_check_branch
      %60 = sbr.rel (0) target = $region33
    $region32: #{tpu_custom_call.1} parent=1 // pred_region
      %61 = dma.done [#allocation6], 512
    $region33: #{tpu_custom_call.1} parent=1 // pred_fallthru
      _
    %v62 = vld [vmem:[#allocation2] sm:$0xff]
    %v63 = vld [vmem:[#allocation2 + $0x8] sm:$0xff]
    %vm64 = vcmask 261120
    %v65 = vsel %vm64, %v62, 0.0
    %v66 = vrot.slane %v65, 4
    %v67 = vadd.f32 %v65, %v66
    %v68 = vrot.slane %v67, 2
    %v69 = vadd.f32 %v67, %v68
    %v70 = vrot.slane %v69, 1
    %v71 = vadd.f32 %v69, %v70
    %v72 = vsel %vm64, %v63, 0.0
    %v73 = vrot.slane %v72, 4
    %v74 = vadd.f32 %v72, %v73
    %v75 = vrot.slane %v74, 2
    %v76 = vadd.f32 %v74, %v75
    %v77 = vrot.slane %v76, 1
    %v78 = vadd.f32 %v76, %v77
    %v79 = vmul.f32 %v71, 0.125
    %v80 = vmul.f32 %v78, 0.125
    %v81 = vld [vmem:[#allocation5] sm:$0xff]
    %v82 = vld [vmem:[#allocation5 + $0x8] sm:$0xff]
    %v83 = vld [vmem:[#allocation5 + $0x10] sm:$0xff]
    %v84 = vld [vmem:[#allocation5 + $0x18] sm:$0xff]
    %v85 = vld [vmem:[%s2] sm:$0x1]
    %v87 = vlaneseq
    %v88 = vshrl.u32 %v87, 7
    %v89 = vsub.s32 0, %v88
    %v90 = vrot.slane %v85, %v89
    %vm94 = vcmask 1041409
    %v95 = vsel %vm94, %v80, %v79
    %v96 = vsel %vm64, %v95, 0
    %98 = vmatprep.subr.mxu0 0.0
    %99 = vmatpush1.msra.mxu0 0.0
    %100 = vmatprep.subr.mxu0 0.0
    %101 = vmatpush1.msra.mxu0 0.0
    %102 = vmatprep.subr.mxu0 0.0
    %103 = vmatpush1.msra.mxu0 0.0
    %104 = vmatprep.subr.mxu0 0.0
    %105 = vmatpush1.msra.mxu0 0.0
    %106 = vmatprep.subr.mxu0 0.0
    %107 = vmatpush1.msra.mxu0 0.0
    %108 = vmatprep.subr.mxu0 0.0
    %109 = vmatpush1.msra.mxu0 0.0
    %110 = vmatprep.subr.mxu0 0.0
    %111 = vmatpush1.msra.mxu0 0.0
    %112 = vmatprep.subr.mxu0 0.0
    %113 = vmatpush1.msra.mxu0 0.0
    %114 = vmatprep.subr.mxu0 0.0
    %115 = vmatpush1.msra.mxu0 0.0
    %116 = vmatprep.subr.mxu0 0.0
    %117 = vmatpush1.msra.mxu0 0.0
    %118 = vmatprep.subr.mxu0 0.0
    %119 = vmatpush1.msra.mxu0 0.0
    %120 = vmatprep.subr.mxu0 0.0
    %121 = vmatpush1.msra.mxu0 0.0
    %122 = vmatprep.subr.mxu0 0.0
    %123 = vmatpush1.msra.mxu0 %v84
    %124 = vmatprep.subr.mxu0 0.0
    %125 = vmatpush1.msra.mxu0 %v83
    %126 = vmatprep.subr.mxu0 0.0
    %127 = vmatpush1.msra.mxu0 %v82
    %128 = vmatprep.subr.mxu0 0.0
    %129 = vmatpush1.msra.mxu0 %v81
    %130 = vmatprep.subr.mxu0 0.0
    %131 = vmatpush2.msra.mxu0 0.0
    %132 = vmatprep.subr.mxu0 0.0
    %133 = vmatpush2.msra.mxu0 0.0
    %134 = vmatprep.subr.mxu0 0.0
    %135 = vmatpush2.msra.mxu0 0.0
    %136 = vmatprep.subr.mxu0 0.0
    %137 = vmatpush2.msra.mxu0 0.0
    %138 = vmatprep.subr.mxu0 0.0
    %139 = vmatpush2.msra.mxu0 0.0
    %140 = vmatprep.subr.mxu0 0.0
    %141 = vmatpush2.msra.mxu0 0.0
    %142 = vmatprep.subr.mxu0 0.0
    %143 = vmatpush2.msra.mxu0 0.0
    %144 = vmatprep.subr.mxu0 0.0
    %145 = vmatpush2.msra.mxu0 0.0
    %146 = vmatprep.subr.mxu0 0.0
    %147 = vmatpush2.msra.mxu0 0.0
    %148 = vmatprep.subr.mxu0 0.0
    %149 = vmatpush2.msra.mxu0 0.0
    %150 = vmatprep.subr.mxu0 0.0
    %151 = vmatpush2.msra.mxu0 0.0
    %152 = vmatprep.subr.mxu0 0.0
    %153 = vmatpush2.msra.mxu0 0.0
    %154 = vmatprep.subr.mxu0 0.0
    %155 = vmatpush2.msra.mxu0 0.0
    %156 = vmatprep.subr.mxu0 0.0
    %157 = vmatpush2.msra.mxu0 0.0
    %158 = vmatprep.subr.mxu0 0.0
    %159 = vmatpush2.msra.mxu0 0.0
    %160 = vmatprep.subr.mxu0 0.0
    %161 = vmatpush2.msra.mxu0 0.0
    %162 = vmatprep.mubr.f32.mxu0 0.0
    %163 = vmatmul.mubr.f32.gmra.mxu0 %v96
    %v164 = vpop.f32.mrf.mxu0
    %v165 = vadd.f32 %v90, %v164
    %v166 = vpop.f32.mrf.mxu0
    %167 = vdwg.mxu0
    %v168 = vld [vmem:[#allocation7] sm:$0xff]
    %v169 = vld [vmem:[#allocation7 + $0x8] sm:$0xff]
    %v170 = vld [vmem:[#allocation7 + $0x10] sm:$0xff]
    %v171 = vld [vmem:[#allocation7 + $0x18] sm:$0xff]
    %v172 = vld [vmem:[%s4] sm:$0x1]
    %v174 = vlaneseq
    %v175 = vshrl.u32 %v174, 7
    %v176 = vsub.s32 0, %v175
    %v177 = vrot.slane %v172, %v176
    %v180 = vsel %vm64, %v165, 0
    %182 = vmatprep.subr.mxu0 0.0
    %183 = vmatpush1.msra.mxu0 0.0
    %184 = vmatprep.subr.mxu0 0.0
    %185 = vmatpush1.msra.mxu0 0.0
    %186 = vmatprep.subr.mxu0 0.0
    %187 = vmatpush1.msra.mxu0 0.0
    %188 = vmatprep.subr.mxu0 0.0
    %189 = vmatpush1.msra.mxu0 0.0
    %190 = vmatprep.subr.mxu0 0.0
    %191 = vmatpush1.msra.mxu0 0.0
    %192 = vmatprep.subr.mxu0 0.0
    %193 = vmatpush1.msra.mxu0 0.0
    %194 = vmatprep.subr.mxu0 0.0
    %195 = vmatpush1.msra.mxu0 0.0
    %196 = vmatprep.subr.mxu0 0.0
    %197 = vmatpush1.msra.mxu0 0.0
    %198 = vmatprep.subr.mxu0 0.0
    %199 = vmatpush1.msra.mxu0 0.0
    %200 = vmatprep.subr.mxu0 0.0
    %201 = vmatpush1.msra.mxu0 0.0
    %202 = vmatprep.subr.mxu0 0.0
    %203 = vmatpush1.msra.mxu0 0.0
    %204 = vmatprep.subr.mxu0 0.0
    %205 = vmatpush1.msra.mxu0 0.0
    %206 = vmatprep.subr.mxu0 0.0
    %207 = vmatpush1.msra.mxu0 %v171
    %208 = vmatprep.subr.mxu0 0.0
    %209 = vmatpush1.msra.mxu0 %v170
    %210 = vmatprep.subr.mxu0 0.0
    %211 = vmatpush1.msra.mxu0 %v169
    %212 = vmatprep.subr.mxu0 0.0
    %213 = vmatpush1.msra.mxu0 %v168
    %214 = vmatprep.subr.mxu0 0.0
    %215 = vmatpush2.msra.mxu0 0.0
    %216 = vmatprep.subr.mxu0 0.0
    %217 = vmatpush2.msra.mxu0 0.0
    %218 = vmatprep.subr.mxu0 0.0
    %219 = vmatpush2.msra.mxu0 0.0
    %220 = vmatprep.subr.mxu0 0.0
    %221 = vmatpush2.msra.mxu0 0.0
    %222 = vmatprep.subr.mxu0 0.0
    %223 = vmatpush2.msra.mxu0 0.0
    %224 = vmatprep.subr.mxu0 0.0
    %225 = vmatpush2.msra.mxu0 0.0
    %226 = vmatprep.subr.mxu0 0.0
    %227 = vmatpush2.msra.mxu0 0.0
    %228 = vmatprep.subr.mxu0 0.0
    %229 = vmatpush2.msra.mxu0 0.0
    %230 = vmatprep.subr.mxu0 0.0
    %231 = vmatpush2.msra.mxu0 0.0
    %232 = vmatprep.subr.mxu0 0.0
    %233 = vmatpush2.msra.mxu0 0.0
    %234 = vmatprep.subr.mxu0 0.0
    %235 = vmatpush2.msra.mxu0 0.0
    %236 = vmatprep.subr.mxu0 0.0
    %237 = vmatpush2.msra.mxu0 0.0
    %238 = vmatprep.subr.mxu0 0.0
    %239 = vmatpush2.msra.mxu0 0.0
    %240 = vmatprep.subr.mxu0 0.0
    %241 = vmatpush2.msra.mxu0 0.0
    %242 = vmatprep.subr.mxu0 0.0
    %243 = vmatpush2.msra.mxu0 0.0
    %244 = vmatprep.subr.mxu0 0.0
    %245 = vmatpush2.msra.mxu0 0.0
    %246 = vmatprep.mubr.f32.mxu0 0.0
    %247 = vmatmul.mubr.f32.gmra.mxu0 %v180
    %v248 = vpop.f32.mrf.mxu0
    %v249 = vadd.f32 %v177, %v248
    %v250 = vpop.f32.mrf.mxu0
    %251 = vdwg.mxu0
    %253 = vrot.lane.b32.xlu0 %v249, 32
    %v254 = vpop.permute.xlu0 %253
    %256 = vrot.lane.b32.xlu0 %v249, 64
    %v257 = vpop.permute.xlu0 %256
    %259 = vrot.lane.b32.xlu0 %v249, 96
    %v260 = vpop.permute.xlu0 %259
    %v262 = vsel %vm64, %v249, %v254
    %vm263 = vcmask 523264
    %v264 = vsel %vm263, %v262, %v257
    %vm265 = vcmask 785408
    %v266 = vsel %vm265, %v264, %v260
    %v268 = vcombine.low %v266, %v266
    %v270 = vunpack.c.l.s4 1983009808
    %v271 = vunpack.c.0.s8 %v270
    %v272 = vlaneseq
    %v273 = vshrl.u32 %v272, 7
    %v274 = vsub.s32 %v271, %v273
    %v275 = vrot.slane %v268, %v274
    %277 = vst [vmem:[#allocation8] sm:$0xf] %v275
    // Predicated region
    $region34: #{tpu_custom_call.1} parent=1 // pred_check
      _
    $region35: #{tpu_custom_call.1} parent=1 // pred_check_branch
      %279 = sbr.rel (0) target = $region37
    $region36: #{tpu_custom_call.1} parent=1 // pred_region
      %s281 = ssub.s32 64, 64
      %282 = vsyncadd [#allocation4], %s281
      %s284 = sshll.u32 [#allocation8], 4
      %s285 = int_to_ptr.vmem [resolvable:$true] %s284
      %287 = dma.vmem_to_hbm [thread:$0]  %s285, 64, %s5, [#allocation4]
    $region37: #{tpu_custom_call.1} parent=1 // pred_fallthru
      _
    // Predicated region
    $region38: #{tpu_custom_call.1} parent=1 // pred_check
      _
    $region39: #{tpu_custom_call.1} parent=1 // pred_check_branch
      %289 = sbr.rel (0) target = $region41
    $region40: #{tpu_custom_call.1} parent=1 // pred_region
      %290 = dma.done [#allocation4], 64
    $region41: #{tpu_custom_call.1} parent=1 // pred_fallthru
      _
    %291 = vsyncpa [#allocation3], 1
    %292 = vsyncpa [#allocation6], 1
    %293 = vsyncpa [#allocation4], 1

</llo_original>
